<compile_context>
chip_gen: v6e
topology: v6e:2x2x1
jax: 0.10.0
libtpu: 0.0.40
codegen_flags: <defaults>
</compile_context>

<pallas_src>
import jax
import jax.numpy as jnp
from jax.experimental import pallas as pl
from jax.experimental.pallas import tpu as pltpu


def _scale_mul_kernel(x_ref, s_ref, o_ref):
    # x_ref: (blk, HW) tile of the input
    # s_ref: (NC, 1) resident per-channel scale; slice this block's rows.
    blk = x_ref.shape[0]
    start = pl.multiple_of(pl.program_id(0) * blk, blk)
    s = s_ref[pl.ds(start, blk), :]                 # (blk, 1)
    o_ref[...] = (x_ref[...] * s).astype(o_ref.dtype)


def _pick_block_rows(nc: int) -> int:
    """Pick a block size along the NC (sublane) axis.

    Prefer a 2-way split (double-buffering with minimal per-step overhead;
    blk stays a multiple of 16 for typical channel counts, so the same tiling
    remains legal for bf16), then 4-way, then 8-way.  Block rows must be a
    multiple of 8 (sublane tiling) unless the block covers the whole axis.
    """
    for nblocks in (2, 4, 8):
        blk = nc // nblocks
        if nc % nblocks == 0 and blk % 8 == 0:
            return blk
    return nc  # single whole-axis block (always legal; no pipelining)


def channel_scale_mul(x, scale):
    """x: (N, C, H, W), scale: (N, C, 1, 1) -> (N, C, H, W) = x * scale."""
    N, C, H, W = x.shape
    assert scale.shape == (N, C, 1, 1)
    NC, HW = N * C, H * W

    x2d = x.reshape(NC, HW)       # contiguous NCHW -> free view
    s2d = scale.reshape(NC, 1)

    blk = _pick_block_rows(NC)
    grid = (NC // blk,)

    out2d = pl.pallas_call(
        _scale_mul_kernel,
        out_shape=jax.ShapeDtypeStruct((NC, HW), x.dtype),
        grid=grid,
        in_specs=[
            pl.BlockSpec((blk, HW), lambda i: (i, 0)),
            # Resident scale: constant index map -> DMA'd once, not per step.
            pl.BlockSpec((NC, 1), lambda i: (0, 0)),
        ],
        out_specs=pl.BlockSpec((blk, HW), lambda i: (i, 0)),
        compiler_params=pltpu.CompilerParams(
            dimension_semantics=("arbitrary",)
        ),
    )(x2d, s2d)

    return out2d.reshape(N, C, H, W)


if __name__ == "__main__":
    key = jax.random.PRNGKey(0)
    k1, k2 = jax.random.split(key)

    # Shapes consistent with the module: x432=[1,1824,7,7], x437=[1,1824,1,1]
    N, C, H, W = 1, 1824, 7, 7
    x432 = jax.random.normal(k1, (N, C, H, W), dtype=jnp.float32)
    x437 = jax.random.normal(k2, (N, C, 1, 1), dtype=jnp.float32)

    out = channel_scale_mul(x432, x437)
    jax.block_until_ready(out)

    # Cross-check against plain JAX broadcasting semantics (same as PyTorch).
    ref = x432 * x437
    assert out.shape == (N, C, H, W)
    assert out.dtype == jnp.float32
    assert jnp.allclose(out, ref, atol=1e-6, rtol=1e-6)

    print("KERNEL_OK")
</pallas_src>

<mosaic_0001>
module attributes {stable_mosaic.version = 11 : i64} {
  func.func @_scale_mul_kernel(%arg0: i32, %arg1: memref<912x49xf32, #tpu.memory_space<vmem>>, %arg2: memref<1824x1xf32, #tpu.memory_space<vmem>>, %arg3: memref<912x49xf32, #tpu.memory_space<vmem>>) attributes {dimension_semantics = [#tpu.dimension_semantics<arbitrary>], iteration_bounds = array<i64: 2>, scalar_prefetch = 0 : i64, scratch_operands = 0 : i64, tpu.core_type = #tpu.core_type<tc>, window_params = [{transform_indices = @transform_0, window_bounds = array<i64: 912, 49>}, {pipeline_mode = #tpu.pipeline_mode<synchronous>, transform_indices = @transform_1, window_bounds = array<i64: 1824, 1>}, {transform_indices = @transform_2, window_bounds = array<i64: 912, 49>}]} {
    %c912_i32 = arith.constant 912 : i32
    %0 = arith.muli %arg0, %c912_i32 : i32
    %1 = tpu.assume_multiple %0, 912 : i32
    %2 = arith.index_cast %1 : i32 to index
    %c0 = arith.constant 0 : index
    %3 = vector.load %arg2[%2, %c0] : memref<1824x1xf32, #tpu.memory_space<vmem>>, vector<912x1xf32>
    %c0_0 = arith.constant 0 : index
    %c0_1 = arith.constant 0 : index
    %4 = vector.load %arg1[%c0_0, %c0_1] : memref<912x49xf32, #tpu.memory_space<vmem>>, vector<912x49xf32>
    %5 = vector.broadcast %3 : vector<912x1xf32> to vector<912x49xf32>
    %6 = arith.mulf %4, %5 : vector<912x49xf32>
    %c0_2 = arith.constant 0 : index
    %c0_3 = arith.constant 0 : index
    %7 = vector.load %arg3[%c0_2, %c0_3] : memref<912x49xf32, #tpu.memory_space<vmem>>, vector<912x49xf32>
    tpu.vector_store %arg3[%c0_2, %c0_3], %6 {strides = array<i32>} : memref<912x49xf32, #tpu.memory_space<vmem>>, vector<912x49xf32>,
    return
  }
  func.func @transform_0(%arg0: i32) -> (i32, i32) {
    %c0_i32 = arith.constant 0 : i32
    %c0_i32_0 = arith.constant 0 : i32
    return %arg0, %c0_i32 : i32, i32
  }
  func.func @transform_1(%arg0: i32) -> (i32, i32) {
    %c0_i32 = arith.constant 0 : i32
    %c0_i32_0 = arith.constant 0 : i32
    %c0_i32_1 = arith.constant 0 : i32
    return %c0_i32, %c0_i32_0 : i32, i32
  }
  func.func @transform_2(%arg0: i32) -> (i32, i32) {
    %c0_i32 = arith.constant 0 : i32
    %c0_i32_0 = arith.constant 0 : i32
    return %arg0, %c0_i32 : i32, i32
  }
}

</mosaic_0001>

<llo_original>
// kernel: tpu_custom_call.1
$region0: #{tpu_custom_call.1}
  #allocation0 [shape = 'u32[]', space=smem, size = 0x4, offset = 0x4, fixed_abs, tag = 'smem constant byte address 0x4 - core index']
  #allocation1 [shape = 'u32[144,128]{1,0:T(1,128)}', space=vmem, size = 0x12000, scoped, tag = 'internal scratch']
  %s0 = inlined_call_operand.vmem [shape: f32[1824,49], index: 0, kind: input, shape index: {}]
  %s1 = inlined_call_operand.vmem [shape: f32[1824,1], index: 1, kind: input, shape index: {}]
  %s2 = inlined_call_operand.vmem [shape: f32[1824,49], index: 2, kind: output, shape index: {}]
  %s3 = sld [smem:[#allocation0]]
  $region41: #{tpu_custom_call.1} parent=0
    _
  %s5 = ssub.s32 1, %s3
  %s6 = scalar_select 0, %s5, %s3
  loop: start=0, step=1, limit=4
  $region2: #{tpu_custom_call.1} parent=0 // loop_pre_header
    _
  $region3: #{tpu_custom_call.1} parent=0 // loop_header
    %s8 = sphi 0, %s12
    %p9 = scmp.ge.s32.totalorder %s8, 4
    %s18 = sphi 0, %s20
    %s21 = sphi 0, %s18
    %s22 = sphi 0, %s21
    %s38 = sphi 0, %s22
    %s42 = sphi 0, %s42
    %s44 = sphi 0, %s42
    %s45 = sphi 0, %s44
    %s59 = sphi 0, %s45
    %s65 = sphi 0, %s67
    %s68 = sphi 0, %s65
    %s69 = sphi 0, %s68
    %s85 = sphi 0, %s69
  $region4: #{tpu_custom_call.1} parent=0 // loop_header_branch
    %11 = sbr.rel (%p9) target = $region8
  $region5: #{tpu_custom_call.1} parent=0 // loop_body
    %s13 = ssub.s32 %s8, 1
    %s14 = ssub.s32 %s8, 2
    %s15 = sadd.s32 %s8, 1
    %s16 = ssub.s32 %s8, %s15
    %p17 = scmp.eq.s32.totalorder %s16, 0
    %s19 = sadd.s32 %s18, 1
    %s20 = scalar_select %p17, %s18, %s19
    %p23 = pneg %p17
    %p24 = scmp.eq.s32.totalorder %s8, 1
    %p25 = por %p23, %p24
    %p26 = scmp.ne.s32.totalorder %s18, %s21
    %p27 = scmp.eq.s32.totalorder %s8, 0
    %p28 = por %p26, %p27
    %p29 = scmp.ne.s32.totalorder %s18, %s21
    %p30 = scmp.eq.s32.totalorder %s13, 1
    %p31 = por %p29, %p30
    %p32 = scmp.ne.s32.totalorder %s21, %s22
    %p33 = scmp.eq.s32.totalorder %s13, 0
    %p34 = por %p32, %p33
    %p35 = scmp.ne.s32.totalorder %s21, %s22
    %p36 = scmp.eq.s32.totalorder %s14, 1
    %p37 = por %p35, %p36
    %p39 = scmp.ne.s32.totalorder %s22, %s38
    %p40 = scmp.eq.s32.totalorder %s14, 0
    %p41 = por %p39, %p40
    %s43 = sadd.s32 %s42, 1
    %p46 = scmp.eq.s32.totalorder %s8, 1
    %p47 = scmp.ne.s32.totalorder %s42, %s44
    %p48 = scmp.eq.s32.totalorder %s8, 0
    %p49 = por %p47, %p48
    %p50 = scmp.ne.s32.totalorder %s42, %s44
    %p51 = scmp.eq.s32.totalorder %s13, 1
    %p52 = por %p50, %p51
    %p53 = scmp.ne.s32.totalorder %s44, %s45
    %p54 = scmp.eq.s32.totalorder %s13, 0
    %p55 = por %p53, %p54
    %p56 = scmp.ne.s32.totalorder %s44, %s45
    %p57 = scmp.eq.s32.totalorder %s14, 1
    %p58 = por %p56, %p57
    %p60 = scmp.ne.s32.totalorder %s45, %s59
    %p61 = scmp.eq.s32.totalorder %s14, 0
    %p62 = por %p60, %p61
    %s63 = ssub.s32 %s8, %s15
    %p64 = scmp.eq.s32.totalorder %s63, 0
    %s66 = sadd.s32 %s65, 1
    %s67 = scalar_select %p64, %s65, %s66
    %p70 = pneg %p64
    %p71 = scmp.eq.s32.totalorder %s8, 1
    %p72 = por %p70, %p71
    %p73 = scmp.ne.s32.totalorder %s65, %s68
    %p74 = scmp.eq.s32.totalorder %s8, 0
    %p75 = por %p73, %p74
    %p76 = scmp.ne.s32.totalorder %s65, %s68
    %p77 = scmp.eq.s32.totalorder %s13, 1
    %p78 = por %p76, %p77
    %p79 = scmp.ne.s32.totalorder %s68, %s69
    %p80 = scmp.eq.s32.totalorder %s13, 0
    %p81 = por %p79, %p80
    %p82 = scmp.ne.s32.totalorder %s68, %s69
    %p83 = scmp.eq.s32.totalorder %s14, 1
    %p84 = por %p82, %p83
    %p86 = scmp.ne.s32.totalorder %s69, %s85
    %p87 = scmp.eq.s32.totalorder %s14, 0
    %p88 = por %p86, %p87
    %p89 = scmp.le.s32.totalorder 1, %s8
    %p90 = scmp.lt.s32.totalorder %s8, 3
    %p91 = pnand %p89, %p90
    %p92 = pneg %p91
    // Predicated region
    $region9: #{tpu_custom_call.1} parent=5 // pred_check
      _
    $region10: #{tpu_custom_call.1} parent=5 // pred_check_branch
      %94 = sbr.rel (%p91) target = $region12
    $region11: #{tpu_custom_call.1} parent=5 // pred_region
      %s95 = ssub.s32 %s8, 1
      // Predicated region
      $region13: #{tpu_custom_call.1} parent=11 // pred_check
        %p96 = pneg %p55
      $region14: #{tpu_custom_call.1} parent=11 // pred_check_branch
        %98 = sbr.rel (%p96) target = $region16
      $region15: #{tpu_custom_call.1} parent=11 // pred_region
        _
      $region16: #{tpu_custom_call.1} parent=11 // pred_fallthru
        _
    $region12: #{tpu_custom_call.1} parent=5 // pred_fallthru
      _
    %p99 = scmp.lt.s32.totalorder %s8, 2
    // Predicated region
    $region17: #{tpu_custom_call.1} parent=5 // pred_check
      %p100 = pneg %p99
    $region18: #{tpu_custom_call.1} parent=5 // pred_check_branch
      %102 = sbr.rel (%p100) target = $region20
    $region19: #{tpu_custom_call.1} parent=5 // pred_region
      // Predicated region
      $region21: #{tpu_custom_call.1} parent=19 // pred_check
        %p103 = pneg %p28
      $region22: #{tpu_custom_call.1} parent=19 // pred_check_branch
        %105 = sbr.rel (%p103) target = $region24
      $region23: #{tpu_custom_call.1} parent=19 // pred_region
        %s106 = smul.u32 114, %s8
        %p107 = scmp.lt.s32.totalorder %s106, 227
        %s108 = scalar_select %p107, %s106, 227
        %s109 = smul.addr %s108, 8
        %s110 = scalar_lea.vmem %s0, %s109
        %s111 = smul.u32 114, %s8
      $region24: #{tpu_custom_call.1} parent=19 // pred_fallthru
        _
    $region20: #{tpu_custom_call.1} parent=5 // pred_fallthru
      _
    %p112 = scmp.le.s32.totalorder 1, %s8
    %p113 = scmp.lt.s32.totalorder %s8, 3
    %p114 = pnand %p112, %p113
    %p115 = pneg %p114
    // Predicated region
    $region25: #{tpu_custom_call.1} parent=5 // pred_check
      _
    $region26: #{tpu_custom_call.1} parent=5 // pred_check_branch
      %117 = sbr.rel (%p114) target = $region28
    $region27: #{tpu_custom_call.1} parent=5 // pred_region
      %s118 = ssub.s32 %s8, 1
      %s119 = smul.u32 114, %s13
      %p120 = scmp.lt.s32.totalorder %s119, 227
      %s121 = scalar_select %p120, %s119, 227
      %s122 = smul.addr %s121, 8
      %s123 = scalar_lea.vmem %s0, %s122
      %p124 = pneg %p34
      %p125 = pneg %p31
      %p126 = pneg %p55
      %p127 = pneg %p52
      %p128 = pneg %p81
      %p129 = pneg %p78
      %s130 = smul.u32 114, %s13
      %p131 = scmp.lt.s32.totalorder %s130, 227
      %s132 = scalar_select %p131, %s130, 227
      %s133 = smul.addr %s132, 8
      %s134 = scalar_lea.vmem %s2, %s133
      %s135 = smul.u32 114, %s13
      %p136 = scmp.lt.s32.totalorder %s135, 227
      %s137 = scalar_select %p136, %s135, 227
      %s138 = smul.addr %s137, 8
      %s139 = scalar_lea.vmem %s0, %s138
      %s140 = smul.u32 114, %s13
      %s141 = smul.u32 114, %s13
      %p142 = scmp.lt.s32.totalorder %s141, 227
      %s143 = scalar_select %p142, %s141, 227
      %s144 = smul.addr %s143, 8
      %s145 = scalar_lea.vmem %s2, %s144
      %s146 = smul.u32 114, %s13
      %s147 = smul.u32 %s13, 912
      %s148 = scalar_lea.vmem %s1, %s147
      %v149 = vld [vmem:[%s148] sm:$0xff]
      %v150 = vld [vmem:[%s148 + $0x8] sm:$0xff]
      %v151 = vld [vmem:[%s148 + $0x10] sm:$0xff]
      %v152 = vld [vmem:[%s148 + $0x18] sm:$0xff]
      %v153 = vld [vmem:[%s148 + $0x20] sm:$0xff]
      %v154 = vld [vmem:[%s148 + $0x28] sm:$0xff]
      %v155 = vld [vmem:[%s148 + $0x30] sm:$0xff]
      %v156 = vld [vmem:[%s148 + $0x38] sm:$0xff]
      %v157 = vld [vmem:[%s148 + $0x40] sm:$0xff]
      %v158 = vld [vmem:[%s148 + $0x48] sm:$0xff]
      %v159 = vld [vmem:[%s148 + $0x50] sm:$0xff]
      %v160 = vld [vmem:[%s148 + $0x58] sm:$0xff]
      %v161 = vld [vmem:[%s148 + $0x60] sm:$0xff]
      %v162 = vld [vmem:[%s148 + $0x68] sm:$0xff]
      %v163 = vld [vmem:[%s148 + $0x70] sm:$0xff]
      %v164 = vld [vmem:[%s148 + $0x78] sm:$0xff]
      %v165 = vld [vmem:[%s148 + $0x80] sm:$0xff]
      %v166 = vld [vmem:[%s148 + $0x88] sm:$0xff]
      %v167 = vld [vmem:[%s148 + $0x90] sm:$0xff]
      %v168 = vld [vmem:[%s148 + $0x98] sm:$0xff]
      %v169 = vld [vmem:[%s148 + $0xa0] sm:$0xff]
      %v170 = vld [vmem:[%s148 + $0xa8] sm:$0xff]
      %v171 = vld [vmem:[%s148 + $0xb0] sm:$0xff]
      %v172 = vld [vmem:[%s148 + $0xb8] sm:$0xff]
      %v173 = vld [vmem:[%s148 + $0xc0] sm:$0xff]
      %v174 = vld [vmem:[%s148 + $0xc8] sm:$0xff]
      %v175 = vld [vmem:[%s148 + $0xd0] sm:$0xff]
      %v176 = vld [vmem:[%s148 + $0xd8] sm:$0xff]
      %v177 = vld [vmem:[%s148 + $0xe0] sm:$0xff]
      %v178 = vld [vmem:[%s148 + $0xe8] sm:$0xff]
      %v179 = vld [vmem:[%s148 + $0xf0] sm:$0xff]
      %v180 = vld [vmem:[%s148 + $0xf8] sm:$0xff]
      %v181 = vld [vmem:[%s148 + $0x100] sm:$0xff]
      %v182 = vld [vmem:[%s148 + $0x108] sm:$0xff]
      %v183 = vld [vmem:[%s148 + $0x110] sm:$0xff]
      %v184 = vld [vmem:[%s148 + $0x118] sm:$0xff]
      %v185 = vld [vmem:[%s148 + $0x120] sm:$0xff]
      %v186 = vld [vmem:[%s148 + $0x128] sm:$0xff]
      %v187 = vld [vmem:[%s148 + $0x130] sm:$0xff]
      %v188 = vld [vmem:[%s148 + $0x138] sm:$0xff]
      %v189 = vld [vmem:[%s148 + $0x140] sm:$0xff]
      %v190 = vld [vmem:[%s148 + $0x148] sm:$0xff]
      %v191 = vld [vmem:[%s148 + $0x150] sm:$0xff]
      %v192 = vld [vmem:[%s148 + $0x158] sm:$0xff]
      %v193 = vld [vmem:[%s148 + $0x160] sm:$0xff]
      %v194 = vld [vmem:[%s148 + $0x168] sm:$0xff]
      %v195 = vld [vmem:[%s148 + $0x170] sm:$0xff]
      %v196 = vld [vmem:[%s148 + $0x178] sm:$0xff]
      %v197 = vld [vmem:[%s148 + $0x180] sm:$0xff]
      %v198 = vld [vmem:[%s148 + $0x188] sm:$0xff]
      %v199 = vld [vmem:[%s148 + $0x190] sm:$0xff]
      %v200 = vld [vmem:[%s148 + $0x198] sm:$0xff]
      %v201 = vld [vmem:[%s148 + $0x1a0] sm:$0xff]
      %v202 = vld [vmem:[%s148 + $0x1a8] sm:$0xff]
      %v203 = vld [vmem:[%s148 + $0x1b0] sm:$0xff]
      %v204 = vld [vmem:[%s148 + $0x1b8] sm:$0xff]
      %v205 = vld [vmem:[%s148 + $0x1c0] sm:$0xff]
      %v206 = vld [vmem:[%s148 + $0x1c8] sm:$0xff]
      %v207 = vld [vmem:[%s148 + $0x1d0] sm:$0xff]
      %v208 = vld [vmem:[%s148 + $0x1d8] sm:$0xff]
      %v209 = vld [vmem:[%s148 + $0x1e0] sm:$0xff]
      %v210 = vld [vmem:[%s148 + $0x1e8] sm:$0xff]
      %v211 = vld [vmem:[%s148 + $0x1f0] sm:$0xff]
      %v212 = vld [vmem:[%s148 + $0x1f8] sm:$0xff]
      %v213 = vld [vmem:[%s148 + $0x200] sm:$0xff]
      %v214 = vld [vmem:[%s148 + $0x208] sm:$0xff]
      %v215 = vld [vmem:[%s148 + $0x210] sm:$0xff]
      %v216 = vld [vmem:[%s148 + $0x218] sm:$0xff]
      %v217 = vld [vmem:[%s148 + $0x220] sm:$0xff]
      %v218 = vld [vmem:[%s148 + $0x228] sm:$0xff]
      %v219 = vld [vmem:[%s148 + $0x230] sm:$0xff]
      %v220 = vld [vmem:[%s148 + $0x238] sm:$0xff]
      %v221 = vld [vmem:[%s148 + $0x240] sm:$0xff]
      %v222 = vld [vmem:[%s148 + $0x248] sm:$0xff]
      %v223 = vld [vmem:[%s148 + $0x250] sm:$0xff]
      %v224 = vld [vmem:[%s148 + $0x258] sm:$0xff]
      %v225 = vld [vmem:[%s148 + $0x260] sm:$0xff]
      %v226 = vld [vmem:[%s148 + $0x268] sm:$0xff]
      %v227 = vld [vmem:[%s148 + $0x270] sm:$0xff]
      %v228 = vld [vmem:[%s148 + $0x278] sm:$0xff]
      %v229 = vld [vmem:[%s148 + $0x280] sm:$0xff]
      %v230 = vld [vmem:[%s148 + $0x288] sm:$0xff]
      %v231 = vld [vmem:[%s148 + $0x290] sm:$0xff]
      %v232 = vld [vmem:[%s148 + $0x298] sm:$0xff]
      %v233 = vld [vmem:[%s148 + $0x2a0] sm:$0xff]
      %v234 = vld [vmem:[%s148 + $0x2a8] sm:$0xff]
      %v235 = vld [vmem:[%s148 + $0x2b0] sm:$0xff]
      %v236 = vld [vmem:[%s148 + $0x2b8] sm:$0xff]
      %v237 = vld [vmem:[%s148 + $0x2c0] sm:$0xff]
      %v238 = vld [vmem:[%s148 + $0x2c8] sm:$0xff]
      %v239 = vld [vmem:[%s148 + $0x2d0] sm:$0xff]
      %v240 = vld [vmem:[%s148 + $0x2d8] sm:$0xff]
      %v241 = vld [vmem:[%s148 + $0x2e0] sm:$0xff]
      %v242 = vld [vmem:[%s148 + $0x2e8] sm:$0xff]
      %v243 = vld [vmem:[%s148 + $0x2f0] sm:$0xff]
      %v244 = vld [vmem:[%s148 + $0x2f8] sm:$0xff]
      %v245 = vld [vmem:[%s148 + $0x300] sm:$0xff]
      %v246 = vld [vmem:[%s148 + $0x308] sm:$0xff]
      %v247 = vld [vmem:[%s148 + $0x310] sm:$0xff]
      %v248 = vld [vmem:[%s148 + $0x318] sm:$0xff]
      %v249 = vld [vmem:[%s148 + $0x320] sm:$0xff]
      %v250 = vld [vmem:[%s148 + $0x328] sm:$0xff]
      %v251 = vld [vmem:[%s148 + $0x330] sm:$0xff]
      %v252 = vld [vmem:[%s148 + $0x338] sm:$0xff]
      %v253 = vld [vmem:[%s148 + $0x340] sm:$0xff]
      %v254 = vld [vmem:[%s148 + $0x348] sm:$0xff]
      %v255 = vld [vmem:[%s148 + $0x350] sm:$0xff]
      %v256 = vld [vmem:[%s148 + $0x358] sm:$0xff]
      %v257 = vld [vmem:[%s148 + $0x360] sm:$0xff]
      %v258 = vld [vmem:[%s148 + $0x368] sm:$0xff]
      %v259 = vld [vmem:[%s148 + $0x370] sm:$0xff]
      %v260 = vld [vmem:[%s148 + $0x378] sm:$0xff]
      %v261 = vld [vmem:[%s148 + $0x380] sm:$0xff]
      %v262 = vld [vmem:[%s148 + $0x388] sm:$0xff]
      %v263 = vld [vmem:[%s139] sm:$0xff]
      %v264 = vld [vmem:[%s139 + $0x8] sm:$0xff]
      %v265 = vld [vmem:[%s139 + $0x10] sm:$0xff]
      %v266 = vld [vmem:[%s139 + $0x18] sm:$0xff]
      %v267 = vld [vmem:[%s139 + $0x20] sm:$0xff]
      %v268 = vld [vmem:[%s139 + $0x28] sm:$0xff]
      %v269 = vld [vmem:[%s139 + $0x30] sm:$0xff]
      %v270 = vld [vmem:[%s139 + $0x38] sm:$0xff]
      %v271 = vld [vmem:[%s139 + $0x40] sm:$0xff]
      %v272 = vld [vmem:[%s139 + $0x48] sm:$0xff]
      %v273 = vld [vmem:[%s139 + $0x50] sm:$0xff]
      %v274 = vld [vmem:[%s139 + $0x58] sm:$0xff]
      %v275 = vld [vmem:[%s139 + $0x60] sm:$0xff]
      %v276 = vld [vmem:[%s139 + $0x68] sm:$0xff]
      %v277 = vld [vmem:[%s139 + $0x70] sm:$0xff]
      %v278 = vld [vmem:[%s139 + $0x78] sm:$0xff]
      %v279 = vld [vmem:[%s139 + $0x80] sm:$0xff]
      %v280 = vld [vmem:[%s139 + $0x88] sm:$0xff]
      %v281 = vld [vmem:[%s139 + $0x90] sm:$0xff]
      %v282 = vld [vmem:[%s139 + $0x98] sm:$0xff]
      %v283 = vld [vmem:[%s139 + $0xa0] sm:$0xff]
      %v284 = vld [vmem:[%s139 + $0xa8] sm:$0xff]
      %v285 = vld [vmem:[%s139 + $0xb0] sm:$0xff]
      %v286 = vld [vmem:[%s139 + $0xb8] sm:$0xff]
      %v287 = vld [vmem:[%s139 + $0xc0] sm:$0xff]
      %v288 = vld [vmem:[%s139 + $0xc8] sm:$0xff]
      %v289 = vld [vmem:[%s139 + $0xd0] sm:$0xff]
      %v290 = vld [vmem:[%s139 + $0xd8] sm:$0xff]
      %v291 = vld [vmem:[%s139 + $0xe0] sm:$0xff]
      %v292 = vld [vmem:[%s139 + $0xe8] sm:$0xff]
      %v293 = vld [vmem:[%s139 + $0xf0] sm:$0xff]
      %v294 = vld [vmem:[%s139 + $0xf8] sm:$0xff]
      %v295 = vld [vmem:[%s139 + $0x100] sm:$0xff]
      %v296 = vld [vmem:[%s139 + $0x108] sm:$0xff]
      %v297 = vld [vmem:[%s139 + $0x110] sm:$0xff]
      %v298 = vld [vmem:[%s139 + $0x118] sm:$0xff]
      %v299 = vld [vmem:[%s139 + $0x120] sm:$0xff]
      %v300 = vld [vmem:[%s139 + $0x128] sm:$0xff]
      %v301 = vld [vmem:[%s139 + $0x130] sm:$0xff]
      %v302 = vld [vmem:[%s139 + $0x138] sm:$0xff]
      %v303 = vld [vmem:[%s139 + $0x140] sm:$0xff]
      %v304 = vld [vmem:[%s139 + $0x148] sm:$0xff]
      %v305 = vld [vmem:[%s139 + $0x150] sm:$0xff]
      %v306 = vld [vmem:[%s139 + $0x158] sm:$0xff]
      %v307 = vld [vmem:[%s139 + $0x160] sm:$0xff]
      %v308 = vld [vmem:[%s139 + $0x168] sm:$0xff]
      %v309 = vld [vmem:[%s139 + $0x170] sm:$0xff]
      %v310 = vld [vmem:[%s139 + $0x178] sm:$0xff]
      %v311 = vld [vmem:[%s139 + $0x180] sm:$0xff]
      %v312 = vld [vmem:[%s139 + $0x188] sm:$0xff]
      %v313 = vld [vmem:[%s139 + $0x190] sm:$0xff]
      %v314 = vld [vmem:[%s139 + $0x198] sm:$0xff]
      %v315 = vld [vmem:[%s139 + $0x1a0] sm:$0xff]
      %v316 = vld [vmem:[%s139 + $0x1a8] sm:$0xff]
      %v317 = vld [vmem:[%s139 + $0x1b0] sm:$0xff]
      %v318 = vld [vmem:[%s139 + $0x1b8] sm:$0xff]
      %v319 = vld [vmem:[%s139 + $0x1c0] sm:$0xff]
      %v320 = vld [vmem:[%s139 + $0x1c8] sm:$0xff]
      %v321 = vld [vmem:[%s139 + $0x1d0] sm:$0xff]
      %v322 = vld [vmem:[%s139 + $0x1d8] sm:$0xff]
      %v323 = vld [vmem:[%s139 + $0x1e0] sm:$0xff]
      %v324 = vld [vmem:[%s139 + $0x1e8] sm:$0xff]
      %v325 = vld [vmem:[%s139 + $0x1f0] sm:$0xff]
      %v326 = vld [vmem:[%s139 + $0x1f8] sm:$0xff]
      %v327 = vld [vmem:[%s139 + $0x200] sm:$0xff]
      %v328 = vld [vmem:[%s139 + $0x208] sm:$0xff]
      %v329 = vld [vmem:[%s139 + $0x210] sm:$0xff]
      %v330 = vld [vmem:[%s139 + $0x218] sm:$0xff]
      %v331 = vld [vmem:[%s139 + $0x220] sm:$0xff]
      %v332 = vld [vmem:[%s139 + $0x228] sm:$0xff]
      %v333 = vld [vmem:[%s139 + $0x230] sm:$0xff]
      %v334 = vld [vmem:[%s139 + $0x238] sm:$0xff]
      %v335 = vld [vmem:[%s139 + $0x240] sm:$0xff]
      %v336 = vld [vmem:[%s139 + $0x248] sm:$0xff]
      %v337 = vld [vmem:[%s139 + $0x250] sm:$0xff]
      %v338 = vld [vmem:[%s139 + $0x258] sm:$0xff]
      %v339 = vld [vmem:[%s139 + $0x260] sm:$0xff]
      %v340 = vld [vmem:[%s139 + $0x268] sm:$0xff]
      %v341 = vld [vmem:[%s139 + $0x270] sm:$0xff]
      %v342 = vld [vmem:[%s139 + $0x278] sm:$0xff]
      %v343 = vld [vmem:[%s139 + $0x280] sm:$0xff]
      %v344 = vld [vmem:[%s139 + $0x288] sm:$0xff]
      %v345 = vld [vmem:[%s139 + $0x290] sm:$0xff]
      %v346 = vld [vmem:[%s139 + $0x298] sm:$0xff]
      %v347 = vld [vmem:[%s139 + $0x2a0] sm:$0xff]
      %v348 = vld [vmem:[%s139 + $0x2a8] sm:$0xff]
      %v349 = vld [vmem:[%s139 + $0x2b0] sm:$0xff]
      %v350 = vld [vmem:[%s139 + $0x2b8] sm:$0xff]
      %v351 = vld [vmem:[%s139 + $0x2c0] sm:$0xff]
      %v352 = vld [vmem:[%s139 + $0x2c8] sm:$0xff]
      %v353 = vld [vmem:[%s139 + $0x2d0] sm:$0xff]
      %v354 = vld [vmem:[%s139 + $0x2d8] sm:$0xff]
      %v355 = vld [vmem:[%s139 + $0x2e0] sm:$0xff]
      %v356 = vld [vmem:[%s139 + $0x2e8] sm:$0xff]
      %v357 = vld [vmem:[%s139 + $0x2f0] sm:$0xff]
      %v358 = vld [vmem:[%s139 + $0x2f8] sm:$0xff]
      %v359 = vld [vmem:[%s139 + $0x300] sm:$0xff]
      %v360 = vld [vmem:[%s139 + $0x308] sm:$0xff]
      %v361 = vld [vmem:[%s139 + $0x310] sm:$0xff]
      %v362 = vld [vmem:[%s139 + $0x318] sm:$0xff]
      %v363 = vld [vmem:[%s139 + $0x320] sm:$0xff]
      %v364 = vld [vmem:[%s139 + $0x328] sm:$0xff]
      %v365 = vld [vmem:[%s139 + $0x330] sm:$0xff]
      %v366 = vld [vmem:[%s139 + $0x338] sm:$0xff]
      %v367 = vld [vmem:[%s139 + $0x340] sm:$0xff]
      %v368 = vld [vmem:[%s139 + $0x348] sm:$0xff]
      %v369 = vld [vmem:[%s139 + $0x350] sm:$0xff]
      %v370 = vld [vmem:[%s139 + $0x358] sm:$0xff]
      %v371 = vld [vmem:[%s139 + $0x360] sm:$0xff]
      %v372 = vld [vmem:[%s139 + $0x368] sm:$0xff]
      %v373 = vld [vmem:[%s139 + $0x370] sm:$0xff]
      %v374 = vld [vmem:[%s139 + $0x378] sm:$0xff]
      %v375 = vld [vmem:[%s139 + $0x380] sm:$0xff]
      %v376 = vld [vmem:[%s139 + $0x388] sm:$0xff]
      %378 = vset.pattern.permute.xlu0 0
      %379 = vperm.xlu0 %378, %v149
      %v380 = vpop.permute.xlu0 %379
      %383 = vset.pattern.permute.xlu0 0
      %384 = vperm.xlu0 %383, %v150
      %v385 = vpop.permute.xlu0 %384
      %388 = vset.pattern.permute.xlu0 0
      %389 = vperm.xlu0 %388, %v151
      %v390 = vpop.permute.xlu0 %389
      %393 = vset.pattern.permute.xlu0 0
      %394 = vperm.xlu0 %393, %v152
      %v395 = vpop.permute.xlu0 %394
      %398 = vset.pattern.permute.xlu0 0
      %399 = vperm.xlu0 %398, %v153
      %v400 = vpop.permute.xlu0 %399
      %403 = vset.pattern.permute.xlu0 0
      %404 = vperm.xlu0 %403, %v154
      %v405 = vpop.permute.xlu0 %404
      %408 = vset.pattern.permute.xlu0 0
      %409 = vperm.xlu0 %408, %v155
      %v410 = vpop.permute.xlu0 %409
      %413 = vset.pattern.permute.xlu0 0
      %414 = vperm.xlu0 %413, %v156
      %v415 = vpop.permute.xlu0 %414
      %418 = vset.pattern.permute.xlu0 0
      %419 = vperm.xlu0 %418, %v157
      %v420 = vpop.permute.xlu0 %419
      %423 = vset.pattern.permute.xlu0 0
      %424 = vperm.xlu0 %423, %v158
      %v425 = vpop.permute.xlu0 %424
      %428 = vset.pattern.permute.xlu0 0
      %429 = vperm.xlu0 %428, %v159
      %v430 = vpop.permute.xlu0 %429
      %433 = vset.pattern.permute.xlu0 0
      %434 = vperm.xlu0 %433, %v160
      %v435 = vpop.permute.xlu0 %434
      %438 = vset.pattern.permute.xlu0 0
      %439 = vperm.xlu0 %438, %v161
      %v440 = vpop.permute.xlu0 %439
      %443 = vset.pattern.permute.xlu0 0
      %444 = vperm.xlu0 %443, %v162
      %v445 = vpop.permute.xlu0 %444
      %448 = vset.pattern.permute.xlu0 0
      %449 = vperm.xlu0 %448, %v163
      %v450 = vpop.permute.xlu0 %449
      %453 = vset.pattern.permute.xlu0 0
      %454 = vperm.xlu0 %453, %v164
      %v455 = vpop.permute.xlu0 %454
      %458 = vset.pattern.permute.xlu0 0
      %459 = vperm.xlu0 %458, %v165
      %v460 = vpop.permute.xlu0 %459
      %463 = vset.pattern.permute.xlu0 0
      %464 = vperm.xlu0 %463, %v166
      %v465 = vpop.permute.xlu0 %464
      %468 = vset.pattern.permute.xlu0 0
      %469 = vperm.xlu0 %468, %v167
      %v470 = vpop.permute.xlu0 %469
      %473 = vset.pattern.permute.xlu0 0
      %474 = vperm.xlu0 %473, %v168
      %v475 = vpop.permute.xlu0 %474
      %478 = vset.pattern.permute.xlu0 0
      %479 = vperm.xlu0 %478, %v169
      %v480 = vpop.permute.xlu0 %479
      %483 = vset.pattern.permute.xlu0 0
      %484 = vperm.xlu0 %483, %v170
      %v485 = vpop.permute.xlu0 %484
      %488 = vset.pattern.permute.xlu0 0
      %489 = vperm.xlu0 %488, %v171
      %v490 = vpop.permute.xlu0 %489
      %493 = vset.pattern.permute.xlu0 0
      %494 = vperm.xlu0 %493, %v172
      %v495 = vpop.permute.xlu0 %494
      %498 = vset.pattern.permute.xlu0 0
      %499 = vperm.xlu0 %498, %v173
      %v500 = vpop.permute.xlu0 %499
      %503 = vset.pattern.permute.xlu0 0
      %504 = vperm.xlu0 %503, %v174
      %v505 = vpop.permute.xlu0 %504
      %508 = vset.pattern.permute.xlu0 0
      %509 = vperm.xlu0 %508, %v175
      %v510 = vpop.permute.xlu0 %509
      %513 = vset.pattern.permute.xlu0 0
      %514 = vperm.xlu0 %513, %v176
      %v515 = vpop.permute.xlu0 %514
      %518 = vset.pattern.permute.xlu0 0
      %519 = vperm.xlu0 %518, %v177
      %v520 = vpop.permute.xlu0 %519
      %523 = vset.pattern.permute.xlu0 0
      %524 = vperm.xlu0 %523, %v178
      %v525 = vpop.permute.xlu0 %524
      %528 = vset.pattern.permute.xlu0 0
      %529 = vperm.xlu0 %528, %v179
      %v530 = vpop.permute.xlu0 %529
      %533 = vset.pattern.permute.xlu0 0
      %534 = vperm.xlu0 %533, %v180
      %v535 = vpop.permute.xlu0 %534
      %538 = vset.pattern.permute.xlu0 0
      %539 = vperm.xlu0 %538, %v181
      %v540 = vpop.permute.xlu0 %539
      %543 = vset.pattern.permute.xlu0 0
      %544 = vperm.xlu0 %543, %v182
      %v545 = vpop.permute.xlu0 %544
      %548 = vset.pattern.permute.xlu0 0
      %549 = vperm.xlu0 %548, %v183
      %v550 = vpop.permute.xlu0 %549
      %553 = vset.pattern.permute.xlu0 0
      %554 = vperm.xlu0 %553, %v184
      %v555 = vpop.permute.xlu0 %554
      %558 = vset.pattern.permute.xlu0 0
      %559 = vperm.xlu0 %558, %v185
      %v560 = vpop.permute.xlu0 %559
      %563 = vset.pattern.permute.xlu0 0
      %564 = vperm.xlu0 %563, %v186
      %v565 = vpop.permute.xlu0 %564
      %568 = vset.pattern.permute.xlu0 0
      %569 = vperm.xlu0 %568, %v187
      %v570 = vpop.permute.xlu0 %569
      %573 = vset.pattern.permute.xlu0 0
      %574 = vperm.xlu0 %573, %v188
      %v575 = vpop.permute.xlu0 %574
      %578 = vset.pattern.permute.xlu0 0
      %579 = vperm.xlu0 %578, %v189
      %v580 = vpop.permute.xlu0 %579
      %583 = vset.pattern.permute.xlu0 0
      %584 = vperm.xlu0 %583, %v190
      %v585 = vpop.permute.xlu0 %584
      %588 = vset.pattern.permute.xlu0 0
      %589 = vperm.xlu0 %588, %v191
      %v590 = vpop.permute.xlu0 %589
      %593 = vset.pattern.permute.xlu0 0
      %594 = vperm.xlu0 %593, %v192
      %v595 = vpop.permute.xlu0 %594
      %598 = vset.pattern.permute.xlu0 0
      %599 = vperm.xlu0 %598, %v193
      %v600 = vpop.permute.xlu0 %599
      %603 = vset.pattern.permute.xlu0 0
      %604 = vperm.xlu0 %603, %v194
      %v605 = vpop.permute.xlu0 %604
      %608 = vset.pattern.permute.xlu0 0
      %609 = vperm.xlu0 %608, %v195
      %v610 = vpop.permute.xlu0 %609
      %613 = vset.pattern.permute.xlu0 0
      %614 = vperm.xlu0 %613, %v196
      %v615 = vpop.permute.xlu0 %614
      %618 = vset.pattern.permute.xlu0 0
      %619 = vperm.xlu0 %618, %v197
      %v620 = vpop.permute.xlu0 %619
      %623 = vset.pattern.permute.xlu0 0
      %624 = vperm.xlu0 %623, %v198
      %v625 = vpop.permute.xlu0 %624
      %628 = vset.pattern.permute.xlu0 0
      %629 = vperm.xlu0 %628, %v199
      %v630 = vpop.permute.xlu0 %629
      %633 = vset.pattern.permute.xlu0 0
      %634 = vperm.xlu0 %633, %v200
      %v635 = vpop.permute.xlu0 %634
      %638 = vset.pattern.permute.xlu0 0
      %639 = vperm.xlu0 %638, %v201
      %v640 = vpop.permute.xlu0 %639
      %643 = vset.pattern.permute.xlu0 0
      %644 = vperm.xlu0 %643, %v202
      %v645 = vpop.permute.xlu0 %644
      %648 = vset.pattern.permute.xlu0 0
      %649 = vperm.xlu0 %648, %v203
      %v650 = vpop.permute.xlu0 %649
      %653 = vset.pattern.permute.xlu0 0
      %654 = vperm.xlu0 %653, %v204
      %v655 = vpop.permute.xlu0 %654
      %658 = vset.pattern.permute.xlu0 0
      %659 = vperm.xlu0 %658, %v205
      %v660 = vpop.permute.xlu0 %659
      %663 = vset.pattern.permute.xlu0 0
      %664 = vperm.xlu0 %663, %v206
      %v665 = vpop.permute.xlu0 %664
      %668 = vset.pattern.permute.xlu0 0
      %669 = vperm.xlu0 %668, %v207
      %v670 = vpop.permute.xlu0 %669
      %673 = vset.pattern.permute.xlu0 0
      %674 = vperm.xlu0 %673, %v208
      %v675 = vpop.permute.xlu0 %674
      %678 = vset.pattern.permute.xlu0 0
      %679 = vperm.xlu0 %678, %v209
      %v680 = vpop.permute.xlu0 %679
      %683 = vset.pattern.permute.xlu0 0
      %684 = vperm.xlu0 %683, %v210
      %v685 = vpop.permute.xlu0 %684
      %688 = vset.pattern.permute.xlu0 0
      %689 = vperm.xlu0 %688, %v211
      %v690 = vpop.permute.xlu0 %689
      %693 = vset.pattern.permute.xlu0 0
      %694 = vperm.xlu0 %693, %v212
      %v695 = vpop.permute.xlu0 %694
      %698 = vset.pattern.permute.xlu0 0
      %699 = vperm.xlu0 %698, %v213
      %v700 = vpop.permute.xlu0 %699
      %703 = vset.pattern.permute.xlu0 0
      %704 = vperm.xlu0 %703, %v214
      %v705 = vpop.permute.xlu0 %704
      %708 = vset.pattern.permute.xlu0 0
      %709 = vperm.xlu0 %708, %v215
      %v710 = vpop.permute.xlu0 %709
      %713 = vset.pattern.permute.xlu0 0
      %714 = vperm.xlu0 %713, %v216
      %v715 = vpop.permute.xlu0 %714
      %718 = vset.pattern.permute.xlu0 0
      %719 = vperm.xlu0 %718, %v217
      %v720 = vpop.permute.xlu0 %719
      %723 = vset.pattern.permute.xlu0 0
      %724 = vperm.xlu0 %723, %v218
      %v725 = vpop.permute.xlu0 %724
      %728 = vset.pattern.permute.xlu0 0
      %729 = vperm.xlu0 %728, %v219
      %v730 = vpop.permute.xlu0 %729
      %733 = vset.pattern.permute.xlu0 0
      %734 = vperm.xlu0 %733, %v220
      %v735 = vpop.permute.xlu0 %734
      %738 = vset.pattern.permute.xlu0 0
      %739 = vperm.xlu0 %738, %v221
      %v740 = vpop.permute.xlu0 %739
      %743 = vset.pattern.permute.xlu0 0
      %744 = vperm.xlu0 %743, %v222
      %v745 = vpop.permute.xlu0 %744
      %748 = vset.pattern.permute.xlu0 0
      %749 = vperm.xlu0 %748, %v223
      %v750 = vpop.permute.xlu0 %749
      %753 = vset.pattern.permute.xlu0 0
      %754 = vperm.xlu0 %753, %v224
      %v755 = vpop.permute.xlu0 %754
      %758 = vset.pattern.permute.xlu0 0
      %759 = vperm.xlu0 %758, %v225
      %v760 = vpop.permute.xlu0 %759
      %763 = vset.pattern.permute.xlu0 0
      %764 = vperm.xlu0 %763, %v226
      %v765 = vpop.permute.xlu0 %764
      %768 = vset.pattern.permute.xlu0 0
      %769 = vperm.xlu0 %768, %v227
      %v770 = vpop.permute.xlu0 %769
      %773 = vset.pattern.permute.xlu0 0
      %774 = vperm.xlu0 %773, %v228
      %v775 = vpop.permute.xlu0 %774
      %778 = vset.pattern.permute.xlu0 0
      %779 = vperm.xlu0 %778, %v229
      %v780 = vpop.permute.xlu0 %779
      %783 = vset.pattern.permute.xlu0 0
      %784 = vperm.xlu0 %783, %v230
      %v785 = vpop.permute.xlu0 %784
      %788 = vset.pattern.permute.xlu0 0
      %789 = vperm.xlu0 %788, %v231
      %v790 = vpop.permute.xlu0 %789
      %793 = vset.pattern.permute.xlu0 0
      %794 = vperm.xlu0 %793, %v232
      %v795 = vpop.permute.xlu0 %794
      %798 = vset.pattern.permute.xlu0 0
      %799 = vperm.xlu0 %798, %v233
      %v800 = vpop.permute.xlu0 %799
      %803 = vset.pattern.permute.xlu0 0
      %804 = vperm.xlu0 %803, %v234
      %v805 = vpop.permute.xlu0 %804
      %808 = vset.pattern.permute.xlu0 0
      %809 = vperm.xlu0 %808, %v235
      %v810 = vpop.permute.xlu0 %809
      %813 = vset.pattern.permute.xlu0 0
      %814 = vperm.xlu0 %813, %v236
      %v815 = vpop.permute.xlu0 %814
      %818 = vset.pattern.permute.xlu0 0
      %819 = vperm.xlu0 %818, %v237
      %v820 = vpop.permute.xlu0 %819
      %823 = vset.pattern.permute.xlu0 0
      %824 = vperm.xlu0 %823, %v238
      %v825 = vpop.permute.xlu0 %824
      %828 = vset.pattern.permute.xlu0 0
      %829 = vperm.xlu0 %828, %v239
      %v830 = vpop.permute.xlu0 %829
      %833 = vset.pattern.permute.xlu0 0
      %834 = vperm.xlu0 %833, %v240
      %v835 = vpop.permute.xlu0 %834
      %838 = vset.pattern.permute.xlu0 0
      %839 = vperm.xlu0 %838, %v241
      %v840 = vpop.permute.xlu0 %839
      %843 = vset.pattern.permute.xlu0 0
      %844 = vperm.xlu0 %843, %v242
      %v845 = vpop.permute.xlu0 %844
      %848 = vset.pattern.permute.xlu0 0
      %849 = vperm.xlu0 %848, %v243
      %v850 = vpop.permute.xlu0 %849
      %853 = vset.pattern.permute.xlu0 0
      %854 = vperm.xlu0 %853, %v244
      %v855 = vpop.permute.xlu0 %854
      %858 = vset.pattern.permute.xlu0 0
      %859 = vperm.xlu0 %858, %v245
      %v860 = vpop.permute.xlu0 %859
      %863 = vset.pattern.permute.xlu0 0
      %864 = vperm.xlu0 %863, %v246
      %v865 = vpop.permute.xlu0 %864
      %868 = vset.pattern.permute.xlu0 0
      %869 = vperm.xlu0 %868, %v247
      %v870 = vpop.permute.xlu0 %869
      %873 = vset.pattern.permute.xlu0 0
      %874 = vperm.xlu0 %873, %v248
      %v875 = vpop.permute.xlu0 %874
      %878 = vset.pattern.permute.xlu0 0
      %879 = vperm.xlu0 %878, %v249
      %v880 = vpop.permute.xlu0 %879
      %883 = vset.pattern.permute.xlu0 0
      %884 = vperm.xlu0 %883, %v250
      %v885 = vpop.permute.xlu0 %884
      %888 = vset.pattern.permute.xlu0 0
      %889 = vperm.xlu0 %888, %v251
      %v890 = vpop.permute.xlu0 %889
      %893 = vset.pattern.permute.xlu0 0
      %894 = vperm.xlu0 %893, %v252
      %v895 = vpop.permute.xlu0 %894
      %898 = vset.pattern.permute.xlu0 0
      %899 = vperm.xlu0 %898, %v253
      %v900 = vpop.permute.xlu0 %899
      %903 = vset.pattern.permute.xlu0 0
      %904 = vperm.xlu0 %903, %v254
      %v905 = vpop.permute.xlu0 %904
      %908 = vset.pattern.permute.xlu0 0
      %909 = vperm.xlu0 %908, %v255
      %v910 = vpop.permute.xlu0 %909
      %913 = vset.pattern.permute.xlu0 0
      %914 = vperm.xlu0 %913, %v256
      %v915 = vpop.permute.xlu0 %914
      %918 = vset.pattern.permute.xlu0 0
      %919 = vperm.xlu0 %918, %v257
      %v920 = vpop.permute.xlu0 %919
      %923 = vset.pattern.permute.xlu0 0
      %924 = vperm.xlu0 %923, %v258
      %v925 = vpop.permute.xlu0 %924
      %928 = vset.pattern.permute.xlu0 0
      %929 = vperm.xlu0 %928, %v259
      %v930 = vpop.permute.xlu0 %929
      %933 = vset.pattern.permute.xlu0 0
      %934 = vperm.xlu0 %933, %v260
      %v935 = vpop.permute.xlu0 %934
      %938 = vset.pattern.permute.xlu0 0
      %939 = vperm.xlu0 %938, %v261
      %v940 = vpop.permute.xlu0 %939
      %943 = vset.pattern.permute.xlu0 0
      %944 = vperm.xlu0 %943, %v262
      %v945 = vpop.permute.xlu0 %944
      %v947 = vmul.f32 %v263, %v380
      %v948 = vmul.f32 %v264, %v385
      %v949 = vmul.f32 %v265, %v390
      %v950 = vmul.f32 %v266, %v395
      %v951 = vmul.f32 %v267, %v400
      %v952 = vmul.f32 %v268, %v405
      %v953 = vmul.f32 %v269, %v410
      %v954 = vmul.f32 %v270, %v415
      %v955 = vmul.f32 %v271, %v420
      %v956 = vmul.f32 %v272, %v425
      %v957 = vmul.f32 %v273, %v430
      %v958 = vmul.f32 %v274, %v435
      %v959 = vmul.f32 %v275, %v440
      %v960 = vmul.f32 %v276, %v445
      %v961 = vmul.f32 %v277, %v450
      %v962 = vmul.f32 %v278, %v455
      %v963 = vmul.f32 %v279, %v460
      %v964 = vmul.f32 %v280, %v465
      %v965 = vmul.f32 %v281, %v470
      %v966 = vmul.f32 %v282, %v475
      %v967 = vmul.f32 %v283, %v480
      %v968 = vmul.f32 %v284, %v485
      %v969 = vmul.f32 %v285, %v490
      %v970 = vmul.f32 %v286, %v495
      %v971 = vmul.f32 %v287, %v500
      %v972 = vmul.f32 %v288, %v505
      %v973 = vmul.f32 %v289, %v510
      %v974 = vmul.f32 %v290, %v515
      %v975 = vmul.f32 %v291, %v520
      %v976 = vmul.f32 %v292, %v525
      %v977 = vmul.f32 %v293, %v530
      %v978 = vmul.f32 %v294, %v535
      %v979 = vmul.f32 %v295, %v540
      %v980 = vmul.f32 %v296, %v545
      %v981 = vmul.f32 %v297, %v550
      %v982 = vmul.f32 %v298, %v555
      %v983 = vmul.f32 %v299, %v560
      %v984 = vmul.f32 %v300, %v565
      %v985 = vmul.f32 %v301, %v570
      %v986 = vmul.f32 %v302, %v575
      %v987 = vmul.f32 %v303, %v580
      %v988 = vmul.f32 %v304, %v585
      %v989 = vmul.f32 %v305, %v590
      %v990 = vmul.f32 %v306, %v595
      %v991 = vmul.f32 %v307, %v600
      %v992 = vmul.f32 %v308, %v605
      %v993 = vmul.f32 %v309, %v610
      %v994 = vmul.f32 %v310, %v615
      %v995 = vmul.f32 %v311, %v620
      %v996 = vmul.f32 %v312, %v625
      %v997 = vmul.f32 %v313, %v630
      %v998 = vmul.f32 %v314, %v635
      %v999 = vmul.f32 %v315, %v640
      %v1000 = vmul.f32 %v316, %v645
      %v1001 = vmul.f32 %v317, %v650
      %v1002 = vmul.f32 %v318, %v655
      %v1003 = vmul.f32 %v319, %v660
      %v1004 = vmul.f32 %v320, %v665
      %v1005 = vmul.f32 %v321, %v670
      %v1006 = vmul.f32 %v322, %v675
      %v1007 = vmul.f32 %v323, %v680
      %v1008 = vmul.f32 %v324, %v685
      %v1009 = vmul.f32 %v325, %v690
      %v1010 = vmul.f32 %v326, %v695
      %v1011 = vmul.f32 %v327, %v700
      %v1012 = vmul.f32 %v328, %v705
      %v1013 = vmul.f32 %v329, %v710
      %v1014 = vmul.f32 %v330, %v715
      %v1015 = vmul.f32 %v331, %v720
      %v1016 = vmul.f32 %v332, %v725
      %v1017 = vmul.f32 %v333, %v730
      %v1018 = vmul.f32 %v334, %v735
      %v1019 = vmul.f32 %v335, %v740
      %v1020 = vmul.f32 %v336, %v745
      %v1021 = vmul.f32 %v337, %v750
      %v1022 = vmul.f32 %v338, %v755
      %v1023 = vmul.f32 %v339, %v760
      %v1024 = vmul.f32 %v340, %v765
      %v1025 = vmul.f32 %v341, %v770
      %v1026 = vmul.f32 %v342, %v775
      %v1027 = vmul.f32 %v343, %v780
      %v1028 = vmul.f32 %v344, %v785
      %v1029 = vmul.f32 %v345, %v790
      %v1030 = vmul.f32 %v346, %v795
      %v1031 = vmul.f32 %v347, %v800
      %v1032 = vmul.f32 %v348, %v805
      %v1033 = vmul.f32 %v349, %v810
      %v1034 = vmul.f32 %v350, %v815
      %v1035 = vmul.f32 %v351, %v820
      %v1036 = vmul.f32 %v352, %v825
      %v1037 = vmul.f32 %v353, %v830
      %v1038 = vmul.f32 %v354, %v835
      %v1039 = vmul.f32 %v355, %v840
      %v1040 = vmul.f32 %v356, %v845
      %v1041 = vmul.f32 %v357, %v850
      %v1042 = vmul.f32 %v358, %v855
      %v1043 = vmul.f32 %v359, %v860
      %v1044 = vmul.f32 %v360, %v865
      %v1045 = vmul.f32 %v361, %v870
      %v1046 = vmul.f32 %v362, %v875
      %v1047 = vmul.f32 %v363, %v880
      %v1048 = vmul.f32 %v364, %v885
      %v1049 = vmul.f32 %v365, %v890
      %v1050 = vmul.f32 %v366, %v895
      %v1051 = vmul.f32 %v367, %v900
      %v1052 = vmul.f32 %v368, %v905
      %v1053 = vmul.f32 %v369, %v910
      %v1054 = vmul.f32 %v370, %v915
      %v1055 = vmul.f32 %v371, %v920
      %v1056 = vmul.f32 %v372, %v925
      %v1057 = vmul.f32 %v373, %v930
      %v1058 = vmul.f32 %v374, %v935
      %v1059 = vmul.f32 %v375, %v940
      %v1060 = vmul.f32 %v376, %v945
      %vm1061 = vcmask 400384
      %1062 = vst.msk [vmem:[%s145] sm:$0xff] %vm1061, %v947
      %1063 = vst.msk [vmem:[%s145 + $0x8] sm:$0xff] %vm1061, %v948
      %1064 = vst.msk [vmem:[%s145 + $0x10] sm:$0xff] %vm1061, %v949
      %1065 = vst.msk [vmem:[%s145 + $0x18] sm:$0xff] %vm1061, %v950
      %1066 = vst.msk [vmem:[%s145 + $0x20] sm:$0xff] %vm1061, %v951
      %1067 = vst.msk [vmem:[%s145 + $0x28] sm:$0xff] %vm1061, %v952
      %1068 = vst.msk [vmem:[%s145 + $0x30] sm:$0xff] %vm1061, %v953
      %1069 = vst.msk [vmem:[%s145 + $0x38] sm:$0xff] %vm1061, %v954
      %1070 = vst.msk [vmem:[%s145 + $0x40] sm:$0xff] %vm1061, %v955
      %1071 = vst.msk [vmem:[%s145 + $0x48] sm:$0xff] %vm1061, %v956
      %1072 = vst.msk [vmem:[%s145 + $0x50] sm:$0xff] %vm1061, %v957
      %1073 = vst.msk [vmem:[%s145 + $0x58] sm:$0xff] %vm1061, %v958
      %1074 = vst.msk [vmem:[%s145 + $0x60] sm:$0xff] %vm1061, %v959
      %1075 = vst.msk [vmem:[%s145 + $0x68] sm:$0xff] %vm1061, %v960
      %1076 = vst.msk [vmem:[%s145 + $0x70] sm:$0xff] %vm1061, %v961
      %1077 = vst.msk [vmem:[%s145 + $0x78] sm:$0xff] %vm1061, %v962
      %1078 = vst.msk [vmem:[%s145 + $0x80] sm:$0xff] %vm1061, %v963
      %1079 = vst.msk [vmem:[%s145 + $0x88] sm:$0xff] %vm1061, %v964
      %1080 = vst.msk [vmem:[%s145 + $0x90] sm:$0xff] %vm1061, %v965
      %1081 = vst.msk [vmem:[%s145 + $0x98] sm:$0xff] %vm1061, %v966
      %1082 = vst.msk [vmem:[%s145 + $0xa0] sm:$0xff] %vm1061, %v967
      %1083 = vst.msk [vmem:[%s145 + $0xa8] sm:$0xff] %vm1061, %v968
      %1084 = vst.msk [vmem:[%s145 + $0xb0] sm:$0xff] %vm1061, %v969
      %1085 = vst.msk [vmem:[%s145 + $0xb8] sm:$0xff] %vm1061, %v970
      %1086 = vst.msk [vmem:[%s145 + $0xc0] sm:$0xff] %vm1061, %v971
      %1087 = vst.msk [vmem:[%s145 + $0xc8] sm:$0xff] %vm1061, %v972
      %1088 = vst.msk [vmem:[%s145 + $0xd0] sm:$0xff] %vm1061, %v973
      %1089 = vst.msk [vmem:[%s145 + $0xd8] sm:$0xff] %vm1061, %v974
      %1090 = vst.msk [vmem:[%s145 + $0xe0] sm:$0xff] %vm1061, %v975
      %1091 = vst.msk [vmem:[%s145 + $0xe8] sm:$0xff] %vm1061, %v976
      %1092 = vst.msk [vmem:[%s145 + $0xf0] sm:$0xff] %vm1061, %v977
      %1093 = vst.msk [vmem:[%s145 + $0xf8] sm:$0xff] %vm1061, %v978
      %1094 = vst.msk [vmem:[%s145 + $0x100] sm:$0xff] %vm1061, %v979
      %1095 = vst.msk [vmem:[%s145 + $0x108] sm:$0xff] %vm1061, %v980
      %1096 = vst.msk [vmem:[%s145 + $0x110] sm:$0xff] %vm1061, %v981
      %1097 = vst.msk [vmem:[%s145 + $0x118] sm:$0xff] %vm1061, %v982
      %1098 = vst.msk [vmem:[%s145 + $0x120] sm:$0xff] %vm1061, %v983
      %1099 = vst.msk [vmem:[%s145 + $0x128] sm:$0xff] %vm1061, %v984
      %1100 = vst.msk [vmem:[%s145 + $0x130] sm:$0xff] %vm1061, %v985
      %1101 = vst.msk [vmem:[%s145 + $0x138] sm:$0xff] %vm1061, %v986
      %1102 = vst.msk [vmem:[%s145 + $0x140] sm:$0xff] %vm1061, %v987
      %1103 = vst.msk [vmem:[%s145 + $0x148] sm:$0xff] %vm1061, %v988
      %1104 = vst.msk [vmem:[%s145 + $0x150] sm:$0xff] %vm1061, %v989
      %1105 = vst.msk [vmem:[%s145 + $0x158] sm:$0xff] %vm1061, %v990
      %1106 = vst.msk [vmem:[%s145 + $0x160] sm:$0xff] %vm1061, %v991
      %1107 = vst.msk [vmem:[%s145 + $0x168] sm:$0xff] %vm1061, %v992
      %1108 = vst.msk [vmem:[%s145 + $0x170] sm:$0xff] %vm1061, %v993
      %1109 = vst.msk [vmem:[%s145 + $0x178] sm:$0xff] %vm1061, %v994
      %1110 = vst.msk [vmem:[%s145 + $0x180] sm:$0xff] %vm1061, %v995
      %1111 = vst.msk [vmem:[%s145 + $0x188] sm:$0xff] %vm1061, %v996
      %1112 = vst.msk [vmem:[%s145 + $0x190] sm:$0xff] %vm1061, %v997
      %1113 = vst.msk [vmem:[%s145 + $0x198] sm:$0xff] %vm1061, %v998
      %1114 = vst.msk [vmem:[%s145 + $0x1a0] sm:$0xff] %vm1061, %v999
      %1115 = vst.msk [vmem:[%s145 + $0x1a8] sm:$0xff] %vm1061, %v1000
      %1116 = vst.msk [vmem:[%s145 + $0x1b0] sm:$0xff] %vm1061, %v1001
      %1117 = vst.msk [vmem:[%s145 + $0x1b8] sm:$0xff] %vm1061, %v1002
      %1118 = vst.msk [vmem:[%s145 + $0x1c0] sm:$0xff] %vm1061, %v1003
      %1119 = vst.msk [vmem:[%s145 + $0x1c8] sm:$0xff] %vm1061, %v1004
      %1120 = vst.msk [vmem:[%s145 + $0x1d0] sm:$0xff] %vm1061, %v1005
      %1121 = vst.msk [vmem:[%s145 + $0x1d8] sm:$0xff] %vm1061, %v1006
      %1122 = vst.msk [vmem:[%s145 + $0x1e0] sm:$0xff] %vm1061, %v1007
      %1123 = vst.msk [vmem:[%s145 + $0x1e8] sm:$0xff] %vm1061, %v1008
      %1124 = vst.msk [vmem:[%s145 + $0x1f0] sm:$0xff] %vm1061, %v1009
      %1125 = vst.msk [vmem:[%s145 + $0x1f8] sm:$0xff] %vm1061, %v1010
      %1126 = vst.msk [vmem:[%s145 + $0x200] sm:$0xff] %vm1061, %v1011
      %1127 = vst.msk [vmem:[%s145 + $0x208] sm:$0xff] %vm1061, %v1012
      %1128 = vst.msk [vmem:[%s145 + $0x210] sm:$0xff] %vm1061, %v1013
      %1129 = vst.msk [vmem:[%s145 + $0x218] sm:$0xff] %vm1061, %v1014
      %1130 = vst.msk [vmem:[%s145 + $0x220] sm:$0xff] %vm1061, %v1015
      %1131 = vst.msk [vmem:[%s145 + $0x228] sm:$0xff] %vm1061, %v1016
      %1132 = vst.msk [vmem:[%s145 + $0x230] sm:$0xff] %vm1061, %v1017
      %1133 = vst.msk [vmem:[%s145 + $0x238] sm:$0xff] %vm1061, %v1018
      %1134 = vst.msk [vmem:[%s145 + $0x240] sm:$0xff] %vm1061, %v1019
      %1135 = vst.msk [vmem:[%s145 + $0x248] sm:$0xff] %vm1061, %v1020
      %1136 = vst.msk [vmem:[%s145 + $0x250] sm:$0xff] %vm1061, %v1021
      %1137 = vst.msk [vmem:[%s145 + $0x258] sm:$0xff] %vm1061, %v1022
      %1138 = vst.msk [vmem:[%s145 + $0x260] sm:$0xff] %vm1061, %v1023
      %1139 = vst.msk [vmem:[%s145 + $0x268] sm:$0xff] %vm1061, %v1024
      %1140 = vst.msk [vmem:[%s145 + $0x270] sm:$0xff] %vm1061, %v1025
      %1141 = vst.msk [vmem:[%s145 + $0x278] sm:$0xff] %vm1061, %v1026
      %1142 = vst.msk [vmem:[%s145 + $0x280] sm:$0xff] %vm1061, %v1027
      %1143 = vst.msk [vmem:[%s145 + $0x288] sm:$0xff] %vm1061, %v1028
      %1144 = vst.msk [vmem:[%s145 + $0x290] sm:$0xff] %vm1061, %v1029
      %1145 = vst.msk [vmem:[%s145 + $0x298] sm:$0xff] %vm1061, %v1030
      %1146 = vst.msk [vmem:[%s145 + $0x2a0] sm:$0xff] %vm1061, %v1031
      %1147 = vst.msk [vmem:[%s145 + $0x2a8] sm:$0xff] %vm1061, %v1032
      %1148 = vst.msk [vmem:[%s145 + $0x2b0] sm:$0xff] %vm1061, %v1033
      %1149 = vst.msk [vmem:[%s145 + $0x2b8] sm:$0xff] %vm1061, %v1034
      %1150 = vst.msk [vmem:[%s145 + $0x2c0] sm:$0xff] %vm1061, %v1035
      %1151 = vst.msk [vmem:[%s145 + $0x2c8] sm:$0xff] %vm1061, %v1036
      %1152 = vst.msk [vmem:[%s145 + $0x2d0] sm:$0xff] %vm1061, %v1037
      %1153 = vst.msk [vmem:[%s145 + $0x2d8] sm:$0xff] %vm1061, %v1038
      %1154 = vst.msk [vmem:[%s145 + $0x2e0] sm:$0xff] %vm1061, %v1039
      %1155 = vst.msk [vmem:[%s145 + $0x2e8] sm:$0xff] %vm1061, %v1040
      %1156 = vst.msk [vmem:[%s145 + $0x2f0] sm:$0xff] %vm1061, %v1041
      %1157 = vst.msk [vmem:[%s145 + $0x2f8] sm:$0xff] %vm1061, %v1042
      %1158 = vst.msk [vmem:[%s145 + $0x300] sm:$0xff] %vm1061, %v1043
      %1159 = vst.msk [vmem:[%s145 + $0x308] sm:$0xff] %vm1061, %v1044
      %1160 = vst.msk [vmem:[%s145 + $0x310] sm:$0xff] %vm1061, %v1045
      %1161 = vst.msk [vmem:[%s145 + $0x318] sm:$0xff] %vm1061, %v1046
      %1162 = vst.msk [vmem:[%s145 + $0x320] sm:$0xff] %vm1061, %v1047
      %1163 = vst.msk [vmem:[%s145 + $0x328] sm:$0xff] %vm1061, %v1048
      %1164 = vst.msk [vmem:[%s145 + $0x330] sm:$0xff] %vm1061, %v1049
      %1165 = vst.msk [vmem:[%s145 + $0x338] sm:$0xff] %vm1061, %v1050
      %1166 = vst.msk [vmem:[%s145 + $0x340] sm:$0xff] %vm1061, %v1051
      %1167 = vst.msk [vmem:[%s145 + $0x348] sm:$0xff] %vm1061, %v1052
      %1168 = vst.msk [vmem:[%s145 + $0x350] sm:$0xff] %vm1061, %v1053
      %1169 = vst.msk [vmem:[%s145 + $0x358] sm:$0xff] %vm1061, %v1054
      %1170 = vst.msk [vmem:[%s145 + $0x360] sm:$0xff] %vm1061, %v1055
      %1171 = vst.msk [vmem:[%s145 + $0x368] sm:$0xff] %vm1061, %v1056
      %1172 = vst.msk [vmem:[%s145 + $0x370] sm:$0xff] %vm1061, %v1057
      %1173 = vst.msk [vmem:[%s145 + $0x378] sm:$0xff] %vm1061, %v1058
      %1174 = vst.msk [vmem:[%s145 + $0x380] sm:$0xff] %vm1061, %v1059
      %1175 = vst.msk [vmem:[%s145 + $0x388] sm:$0xff] %vm1061, %v1060
      %s1176 = smul.u32 114, %s13
      %p1177 = scmp.lt.s32.totalorder %s1176, 227
      %s1178 = scalar_select %p1177, %s1176, 227
      %s1179 = smul.addr %s1178, 8
      %s1180 = scalar_lea.vmem %s2, %s1179
      // Predicated region
      $region29: #{tpu_custom_call.1} parent=27 // pred_check
        %p1181 = pneg %p78
      $region30: #{tpu_custom_call.1} parent=27 // pred_check_branch
        %1183 = sbr.rel (%p1181) target = $region32
      $region31: #{tpu_custom_call.1} parent=27 // pred_region
        %s1184 = smul.u32 114, %s13
      $region32: #{tpu_custom_call.1} parent=27 // pred_fallthru
        _
    $region28: #{tpu_custom_call.1} parent=5 // pred_fallthru
      _
    %p1185 = scmp.le.s32.totalorder 2, %s8
    // Predicated region
    $region33: #{tpu_custom_call.1} parent=5 // pred_check
      %p1186 = pneg %p1185
    $region34: #{tpu_custom_call.1} parent=5 // pred_check_branch
      %1188 = sbr.rel (%p1186) target = $region36
    $region35: #{tpu_custom_call.1} parent=5 // pred_region
      %s1189 = ssub.s32 %s8, 2
      // Predicated region
      $region37: #{tpu_custom_call.1} parent=35 // pred_check
        %p1190 = pneg %p84
      $region38: #{tpu_custom_call.1} parent=35 // pred_check_branch
        %1192 = sbr.rel (%p1190) target = $region40
      $region39: #{tpu_custom_call.1} parent=35 // pred_region
        %s1193 = smul.u32 114, %s14
        %p1194 = scmp.lt.s32.totalorder %s1193, 227
        %s1195 = scalar_select %p1194, %s1193, 227
        %s1196 = smul.addr %s1195, 8
        %s1197 = scalar_lea.vmem %s2, %s1196
      $region40: #{tpu_custom_call.1} parent=35 // pred_fallthru
        _
    $region36: #{tpu_custom_call.1} parent=5 // pred_fallthru
      _
  $region6: #{tpu_custom_call.1} parent=0 // loop_footer
    %s12 = sadd.s32 1, %s8
  $region7: #{tpu_custom_call.1} parent=0 // loop_footer_branch
    %7 = sbr.rel target = $region3
  $region8: #{tpu_custom_call.1} parent=0 // loop_exit
    _

</llo_original>
